<compile_context>
chip_gen: v7x
topology: tpu7x:2x2x1
jax: 0.10.0
libtpu: 0.0.40
codegen_flags: <defaults>
</compile_context>

<pallas_src>
import jax
import jax.numpy as jnp
from jax.experimental import pallas as pl
from jax.experimental.pallas import tpu as pltpu


def _downsample_fused_kernel(zv_ref, zh_ref, wv0_ref, wv1_ref, wh_ref,
                             bv_ref, bh_ref, ov_ref, oh_ref):
    """One grid step = `bt` images of BOTH convolutions.

    zv_ref : (bt, Ho, Wo+1, 4*Cin)  phase-packed padded input of v_down
    zh_ref : (bt, Ho, Wo,   4*Cin)  phase-packed padded input of h_down
    wv0/wv1/wh : (4*Cin, Cout)      taps fused into the contraction dim
    bv/bh  : (1, Cout)
    ov/oh  : (bt, Ho, Wo, Cout)
    """
    bt, ho, wo, kc = zh_ref.shape
    cout = wh_ref.shape[1]
    m = bt * ho * wo                      # batch folded into the matmul M dim

    # ---- h_down: all 4 taps fused into a single MXU contraction ----
    ah = zh_ref[...].reshape(m, kc)
    acc_h = jnp.dot(ah, wh_ref[...], preferred_element_type=jnp.float32)
    acc_h = acc_h + bh_ref[...]
    oh_ref[...] = acc_h.reshape(bt, ho, wo, cout).astype(oh_ref.dtype)

    # ---- v_down: kernel width 3 @ stride 2 spans two column-phase blocks ----
    zv = zv_ref[...]
    a0 = zv[:, :, 0:wo, :].reshape(m, kc)        # taps (kh in {0,1}, kw in {0,1})
    a1 = zv[:, :, 1:wo + 1, :].reshape(m, kc)    # tap  (kh in {0,1}, kw = 2)
    acc_v = jnp.dot(a0, wv0_ref[...], preferred_element_type=jnp.float32)
    acc_v = acc_v + jnp.dot(a1, wv1_ref[...], preferred_element_type=jnp.float32)
    acc_v = acc_v + bv_ref[...]
    ov_ref[...] = acc_v.reshape(bt, ho, wo, cout).astype(ov_ref.dtype)


def _phase_pack(x_nhwc, pad_t, pad_l, pad_r, ho, wz):
    """Causal pad, crop/zero-pad to (2*ho, 2*wz), then 2x2 space-to-depth.

    Returns z of shape (N, ho, wz, 4*C) with
        z[n, i, j, pr*2C + pc*C + c] = x_padded[n, 2*i + pr, 2*j + pc, c].
    Pure 1x-data layout glue -- no K-times im2col copy written to HBM.
    """
    n, _, _, c = x_nhwc.shape
    x = jnp.pad(x_nhwc, ((0, 0), (pad_t, 0), (pad_l, pad_r), (0, 0)))
    th, tw = 2 * ho, 2 * wz
    x = x[:, :min(x.shape[1], th), :min(x.shape[2], tw), :]
    x = jnp.pad(x, ((0, 0), (0, th - x.shape[1]), (0, tw - x.shape[2]), (0, 0)))
    x = x.reshape(n, ho, 2, wz, 2, c)
    x = jnp.transpose(x, (0, 1, 3, 2, 4, 5))
    return x.reshape(n, ho, wz, 4 * c)


def _pick_batch_tile(n, per_image_bytes, budget_bytes=6 << 20):
    """Largest divisor of n whose per-step working set fits the budget,
    then split once more (if possible) so the grid has >= 2 steps."""
    best = 1
    for bt in range(1, n + 1):
        if n % bt == 0 and bt * per_image_bytes <= budget_bytes:
            best = bt
    if best == n and n >= 2:
        for bt in range(n // 2, 0, -1):
            if n % bt == 0:
                best = bt
                break
    return best


def downsample_forward(vx, hx, params):
    """Downsample.forward: (vx, hx) NCHW -> (vx_down, hx_down) NCHW."""
    n, c_in, h, w = vx.shape
    c_out = params["v_w"].shape[0]
    ho = (h - 1) // 2 + 1       # (H + pad_top - KH)//2 + 1 ; same for both convs
    wo = (w - 1) // 2 + 1

    # NCHW -> NHWC, then 2x2 phase-pack (stride-2 space-to-depth).
    vx_nhwc = jnp.transpose(vx, (0, 2, 3, 1))
    hx_nhwc = jnp.transpose(hx, (0, 2, 3, 1))
    zv = _phase_pack(vx_nhwc, pad_t=1, pad_l=1, pad_r=1, ho=ho, wz=wo + 1)
    zh = _phase_pack(hx_nhwc, pad_t=1, pad_l=1, pad_r=0, ho=ho, wz=wo)

    # Fuse taps into the contraction dim: (Cout, Cin, KH, KW) -> (KH, KW, Cin, Cout).
    v_w_t = jnp.transpose(params["v_w"], (2, 3, 1, 0))          # (2, 3, Cin, Cout)
    h_w_t = jnp.transpose(params["h_w"], (2, 3, 1, 0))          # (2, 2, Cin, Cout)
    wv0 = v_w_t[:, 0:2].reshape(4 * c_in, c_out)                # taps kw in {0,1}
    wv1 = jnp.concatenate(                                      # tap kw=2 lives in
        [v_w_t[:, 2:3], jnp.zeros_like(v_w_t[:, 2:3])], axis=1  # col-phase 0 of the
    ).reshape(4 * c_in, c_out)                                  # next block; phase 1 zeroed
    wh = h_w_t.reshape(4 * c_in, c_out)
    bv = params["v_b"].reshape(1, c_out)
    bh = params["h_b"].reshape(1, c_out)

    kc = 4 * c_in
    elt = jnp.dtype(vx.dtype).itemsize
    per_image_bytes = (ho * (wo + 1) * kc + ho * wo * kc        # zv + zh blocks
                       + 2 * ho * wo * c_out) * elt             # two output blocks
    bt = _pick_batch_tile(n, per_image_bytes)
    grid_n = n // bt

    ov, oh = pl.pallas_call(
        _downsample_fused_kernel,
        out_shape=(jax.ShapeDtypeStruct((n, ho, wo, c_out), vx.dtype),
                   jax.ShapeDtypeStruct((n, ho, wo, c_out), hx.dtype)),
        grid=(grid_n,),
        in_specs=[
            pl.BlockSpec((bt, ho, wo + 1, kc), lambda i: (i, 0, 0, 0)),
            pl.BlockSpec((bt, ho, wo, kc), lambda i: (i, 0, 0, 0)),
            pl.BlockSpec((kc, c_out), lambda i: (0, 0)),
            pl.BlockSpec((kc, c_out), lambda i: (0, 0)),
            pl.BlockSpec((kc, c_out), lambda i: (0, 0)),
            pl.BlockSpec((1, c_out), lambda i: (0, 0)),
            pl.BlockSpec((1, c_out), lambda i: (0, 0)),
        ],
        out_specs=(
            pl.BlockSpec((bt, ho, wo, c_out), lambda i: (i, 0, 0, 0)),
            pl.BlockSpec((bt, ho, wo, c_out), lambda i: (i, 0, 0, 0)),
        ),
        compiler_params=pltpu.CompilerParams(dimension_semantics=("parallel",)),
    )(zv, zh, wv0, wv1, wh, bv, bh)

    # (N, Ho, Wo, Cout) -> NCHW
    return jnp.transpose(ov, (0, 3, 1, 2)), jnp.transpose(oh, (0, 3, 1, 2))


def _reference_conv(x_nchw, weight_oihw, bias, pad_hw, stride=2):
    out = jax.lax.conv_general_dilated(
        x_nchw, weight_oihw, window_strides=(stride, stride),
        padding=pad_hw, dimension_numbers=("NCHW", "OIHW", "NCHW"))
    return out + bias.reshape(1, -1, 1, 1)


if __name__ == "__main__":
    N, C, H, W = 2, 4, 16, 16
    key = jax.random.PRNGKey(0)
    k_vx, k_hx, k_vw, k_vb, k_hw, k_hb = jax.random.split(key, 6)

    vx = jax.random.normal(k_vx, (N, C, H, W), dtype=jnp.float32)
    hx = jax.random.normal(k_hx, (N, C, H, W), dtype=jnp.float32)

    # Deterministic synthetic parameters (Conv2d shapes: (Cout, Cin, KH, KW) + (Cout,))
    params = {
        "v_w": 0.1 * jax.random.normal(k_vw, (C, C, 2, 3), dtype=jnp.float32),
        "v_b": 0.1 * jax.random.normal(k_vb, (C,), dtype=jnp.float32),
        "h_w": 0.1 * jax.random.normal(k_hw, (C, C, 2, 2), dtype=jnp.float32),
        "h_b": 0.1 * jax.random.normal(k_hb, (C,), dtype=jnp.float32),
    }

    vx_out, hx_out = jax.block_until_ready(downsample_forward(vx, hx, params))

    # Pure-JAX reference (same padding convention as F.pad + Conv2d)
    vx_ref = _reference_conv(vx, params["v_w"], params["v_b"], ((1, 0), (1, 1)))
    hx_ref = _reference_conv(hx, params["h_w"], params["h_b"], ((1, 0), (1, 0)))

    assert vx_out.shape == (N, C, H // 2, W // 2)
    assert hx_out.shape == (N, C, H // 2, W // 2)
    assert jnp.allclose(vx_out, vx_ref, atol=1e-5, rtol=1e-5)
    assert jnp.allclose(hx_out, hx_ref, atol=1e-5, rtol=1e-5)

    print("KERNEL_OK")
</pallas_src>

<mosaic_0001>
module attributes {stable_mosaic.version = 11 : i64} {
  func.func @_downsample_fused_kernel(%arg0: i32, %arg1: memref<1x8x9x16xf32, #tpu.memory_space<vmem>>, %arg2: memref<1x8x8x16xf32, #tpu.memory_space<vmem>>, %arg3: memref<16x4xf32, #tpu.memory_space<vmem>>, %arg4: memref<16x4xf32, #tpu.memory_space<vmem>>, %arg5: memref<16x4xf32, #tpu.memory_space<vmem>>, %arg6: memref<1x4xf32, #tpu.memory_space<vmem>>, %arg7: memref<1x4xf32, #tpu.memory_space<vmem>>, %arg8: memref<1x8x8x4xf32, #tpu.memory_space<vmem>>, %arg9: memref<1x8x8x4xf32, #tpu.memory_space<vmem>>) attributes {dimension_semantics = [#tpu.dimension_semantics<parallel>], iteration_bounds = array<i64: 2>, scalar_prefetch = 0 : i64, scratch_operands = 0 : i64, tpu.core_type = #tpu.core_type<tc>, window_params = [{transform_indices = @transform_0, window_bounds = array<i64: 1, 8, 9, 16>}, {transform_indices = @transform_1, window_bounds = array<i64: 1, 8, 8, 16>}, {pipeline_mode = #tpu.pipeline_mode<synchronous>, transform_indices = @transform_2, window_bounds = array<i64: 16, 4>}, {pipeline_mode = #tpu.pipeline_mode<synchronous>, transform_indices = @transform_3, window_bounds = array<i64: 16, 4>}, {pipeline_mode = #tpu.pipeline_mode<synchronous>, transform_indices = @transform_4, window_bounds = array<i64: 16, 4>}, {pipeline_mode = #tpu.pipeline_mode<synchronous>, transform_indices = @transform_5, window_bounds = array<i64: 1, 4>}, {pipeline_mode = #tpu.pipeline_mode<synchronous>, transform_indices = @transform_6, window_bounds = array<i64: 1, 4>}, {transform_indices = @transform_7, window_bounds = array<i64: 1, 8, 8, 4>}, {transform_indices = @transform_8, window_bounds = array<i64: 1, 8, 8, 4>}]} {
    %c0 = arith.constant 0 : index
    %c0_0 = arith.constant 0 : index
    %c0_1 = arith.constant 0 : index
    %c0_2 = arith.constant 0 : index
    %0 = vector.load %arg2[%c0, %c0_0, %c0_1, %c0_2] : memref<1x8x8x16xf32, #tpu.memory_space<vmem>>, vector<1x8x8x16xf32>
    %1 = vector.shape_cast %0 : vector<1x8x8x16xf32> to vector<64x16xf32>
    %c0_3 = arith.constant 0 : index
    %c0_4 = arith.constant 0 : index
    %2 = vector.load %arg5[%c0_3, %c0_4] : memref<16x4xf32, #tpu.memory_space<vmem>>, vector<16x4xf32>
    %cst = arith.constant dense<0.000000e+00> : vector<64x4xf32>
    %3 = tpu.matmul %1, %2, %cst {dimension_numbers = #tpu.dot_dimension_numbers<[1], [0], [0], [1], [0, 0, 1, 1], [], []>} : vector<64x16xf32>, vector<16x4xf32>, vector<64x4xf32> -> vector<64x4xf32>
    %c0_5 = arith.constant 0 : index
    %c0_6 = arith.constant 0 : index
    %4 = vector.load %arg7[%c0_5, %c0_6] : memref<1x4xf32, #tpu.memory_space<vmem>>, vector<1x4xf32>
    %5 = vector.broadcast %4 : vector<1x4xf32> to vector<64x4xf32>
    %6 = arith.addf %3, %5 : vector<64x4xf32>
    %7 = vector.shape_cast %6 : vector<64x4xf32> to vector<1x8x8x4xf32>
    %c0_7 = arith.constant 0 : index
    %c0_8 = arith.constant 0 : index
    %c0_9 = arith.constant 0 : index
    %c0_10 = arith.constant 0 : index
    %8 = vector.load %arg9[%c0_7, %c0_8, %c0_9, %c0_10] : memref<1x8x8x4xf32, #tpu.memory_space<vmem>>, vector<1x8x8x4xf32>
    tpu.vector_store %arg9[%c0_7, %c0_8, %c0_9, %c0_10], %7 {strides = array<i32>} : memref<1x8x8x4xf32, #tpu.memory_space<vmem>>, vector<1x8x8x4xf32>,
    %c0_11 = arith.constant 0 : index
    %c0_12 = arith.constant 0 : index
    %c0_13 = arith.constant 0 : index
    %c0_14 = arith.constant 0 : index
    %9 = vector.load %arg1[%c0_11, %c0_12, %c0_13, %c0_14] : memref<1x8x9x16xf32, #tpu.memory_space<vmem>>, vector<1x8x9x16xf32>
    %10 = vector.extract_strided_slice %9 {offsets = [0, 0, 0, 0], sizes = [1, 8, 8, 16], strides = [1, 1, 1, 1]} : vector<1x8x9x16xf32> to vector<1x8x8x16xf32>
    %11 = vector.shape_cast %10 : vector<1x8x8x16xf32> to vector<64x16xf32>
    %12 = vector.extract_strided_slice %9 {offsets = [0, 0, 1, 0], sizes = [1, 8, 8, 16], strides = [1, 1, 1, 1]} : vector<1x8x9x16xf32> to vector<1x8x8x16xf32>
    %13 = vector.shape_cast %12 : vector<1x8x8x16xf32> to vector<64x16xf32>
    %c0_15 = arith.constant 0 : index
    %c0_16 = arith.constant 0 : index
    %14 = vector.load %arg3[%c0_15, %c0_16] : memref<16x4xf32, #tpu.memory_space<vmem>>, vector<16x4xf32>
    %cst_17 = arith.constant dense<0.000000e+00> : vector<64x4xf32>
    %15 = tpu.matmul %11, %14, %cst_17 {dimension_numbers = #tpu.dot_dimension_numbers<[1], [0], [0], [1], [0, 0, 1, 1], [], []>} : vector<64x16xf32>, vector<16x4xf32>, vector<64x4xf32> -> vector<64x4xf32>
    %c0_18 = arith.constant 0 : index
    %c0_19 = arith.constant 0 : index
    %16 = vector.load %arg4[%c0_18, %c0_19] : memref<16x4xf32, #tpu.memory_space<vmem>>, vector<16x4xf32>
    %cst_20 = arith.constant dense<0.000000e+00> : vector<64x4xf32>
    %17 = tpu.matmul %13, %16, %cst_20 {dimension_numbers = #tpu.dot_dimension_numbers<[1], [0], [0], [1], [0, 0, 1, 1], [], []>} : vector<64x16xf32>, vector<16x4xf32>, vector<64x4xf32> -> vector<64x4xf32>
    %18 = arith.addf %15, %17 : vector<64x4xf32>
    %c0_21 = arith.constant 0 : index
    %c0_22 = arith.constant 0 : index
    %19 = vector.load %arg6[%c0_21, %c0_22] : memref<1x4xf32, #tpu.memory_space<vmem>>, vector<1x4xf32>
    %20 = vector.broadcast %19 : vector<1x4xf32> to vector<64x4xf32>
    %21 = arith.addf %18, %20 : vector<64x4xf32>
    %22 = vector.shape_cast %21 : vector<64x4xf32> to vector<1x8x8x4xf32>
    %c0_23 = arith.constant 0 : index
    %c0_24 = arith.constant 0 : index
    %c0_25 = arith.constant 0 : index
    %c0_26 = arith.constant 0 : index
    %23 = vector.load %arg8[%c0_23, %c0_24, %c0_25, %c0_26] : memref<1x8x8x4xf32, #tpu.memory_space<vmem>>, vector<1x8x8x4xf32>
    tpu.vector_store %arg8[%c0_23, %c0_24, %c0_25, %c0_26], %22 {strides = array<i32>} : memref<1x8x8x4xf32, #tpu.memory_space<vmem>>, vector<1x8x8x4xf32>,
    return
  }
  func.func @transform_0(%arg0: i32) -> (i32, i32, i32, i32) {
    %c0_i32 = arith.constant 0 : i32
    %c0_i32_0 = arith.constant 0 : i32
    %c0_i32_1 = arith.constant 0 : i32
    %c0_i32_2 = arith.constant 0 : i32
    return %arg0, %c0_i32, %c0_i32_0, %c0_i32_1 : i32, i32, i32, i32
  }
  func.func @transform_1(%arg0: i32) -> (i32, i32, i32, i32) {
    %c0_i32 = arith.constant 0 : i32
    %c0_i32_0 = arith.constant 0 : i32
    %c0_i32_1 = arith.constant 0 : i32
    %c0_i32_2 = arith.constant 0 : i32
    return %arg0, %c0_i32, %c0_i32_0, %c0_i32_1 : i32, i32, i32, i32
  }
  func.func @transform_2(%arg0: i32) -> (i32, i32) {
    %c0_i32 = arith.constant 0 : i32
    %c0_i32_0 = arith.constant 0 : i32
    %c0_i32_1 = arith.constant 0 : i32
    return %c0_i32, %c0_i32_0 : i32, i32
  }
  func.func @transform_3(%arg0: i32) -> (i32, i32) {
    %c0_i32 = arith.constant 0 : i32
    %c0_i32_0 = arith.constant 0 : i32
    %c0_i32_1 = arith.constant 0 : i32
    return %c0_i32, %c0_i32_0 : i32, i32
  }
  func.func @transform_4(%arg0: i32) -> (i32, i32) {
    %c0_i32 = arith.constant 0 : i32
    %c0_i32_0 = arith.constant 0 : i32
    %c0_i32_1 = arith.constant 0 : i32
    return %c0_i32, %c0_i32_0 : i32, i32
  }
  func.func @transform_5(%arg0: i32) -> (i32, i32) {
    %c0_i32 = arith.constant 0 : i32
    %c0_i32_0 = arith.constant 0 : i32
    %c0_i32_1 = arith.constant 0 : i32
    return %c0_i32, %c0_i32_0 : i32, i32
  }
  func.func @transform_6(%arg0: i32) -> (i32, i32) {
    %c0_i32 = arith.constant 0 : i32
    %c0_i32_0 = arith.constant 0 : i32
    %c0_i32_1 = arith.constant 0 : i32
    return %c0_i32, %c0_i32_0 : i32, i32
  }
  func.func @transform_7(%arg0: i32) -> (i32, i32, i32, i32) {
    %c0_i32 = arith.constant 0 : i32
    %c0_i32_0 = arith.constant 0 : i32
    %c0_i32_1 = arith.constant 0 : i32
    %c0_i32_2 = arith.constant 0 : i32
    return %arg0, %c0_i32, %c0_i32_0, %c0_i32_1 : i32, i32, i32, i32
  }
  func.func @transform_8(%arg0: i32) -> (i32, i32, i32, i32) {
    %c0_i32 = arith.constant 0 : i32
    %c0_i32_0 = arith.constant 0 : i32
    %c0_i32_1 = arith.constant 0 : i32
    %c0_i32_2 = arith.constant 0 : i32
    return %arg0, %c0_i32, %c0_i32_0, %c0_i32_1 : i32, i32, i32, i32
  }
}

</mosaic_0001>

<llo_original>
// kernel: tpu_custom_call.1
$region0: #{tpu_custom_call.1}
  #allocation0 [shape = 'u32[]', space=smem, size = 0x4, offset = 0x4, fixed_abs, tag = 'smem constant byte address 0x4 - core index']
  #allocation1 [shape = 'u32[144,128]{1,0:T(1,128)}', space=vmem, size = 0x12000, scoped, tag = 'internal scratch']
  %s0 = inlined_call_operand.vmem [shape: f32[2,8,9,16], index: 0, kind: input, shape index: {}]
  %s1 = inlined_call_operand.vmem [shape: f32[2,8,8,16], index: 1, kind: input, shape index: {}]
  %s2 = inlined_call_operand.vmem [shape: f32[16,4], index: 2, kind: input, shape index: {}]
  %s3 = inlined_call_operand.vmem [shape: f32[16,4], index: 3, kind: input, shape index: {}]
  %s4 = inlined_call_operand.vmem [shape: f32[16,4], index: 4, kind: input, shape index: {}]
  %s5 = inlined_call_operand.vmem [shape: f32[1,4], index: 5, kind: input, shape index: {}]
  %s6 = inlined_call_operand.vmem [shape: f32[1,4], index: 6, kind: input, shape index: {}]
  %s7 = inlined_call_operand.vmem [shape: f32[2,8,8,4], index: 7, kind: output, shape index: {0}]
  %s8 = inlined_call_operand.vmem [shape: f32[2,8,8,4], index: 8, kind: output, shape index: {1}]
  %9 = xla_tuple %s7, %s8
  %s10 = sld [smem:[#allocation0]]
  $region69: #{tpu_custom_call.1} parent=0
    _
  %s12 = ssub.s32 1, %s10
  %s13 = scalar_select 0, %s12, %s10
  loop: start=0, step=1, limit=4
  $region2: #{tpu_custom_call.1} parent=0 // loop_pre_header
    _
  $region3: #{tpu_custom_call.1} parent=0 // loop_header
    %s15 = sphi 0, %s19
    %p16 = scmp.ge.s32.totalorder %s15, 4
    %s25 = sphi 0, %s27
    %s28 = sphi 0, %s25
    %s29 = sphi 0, %s28
    %s45 = sphi 0, %s29
    %s51 = sphi 0, %s53
    %s54 = sphi 0, %s51
    %s55 = sphi 0, %s54
    %s71 = sphi 0, %s55
    %s75 = sphi 0, %s75
    %s77 = sphi 0, %s75
    %s78 = sphi 0, %s77
    %s92 = sphi 0, %s78
    %s96 = sphi 0, %s96
    %s98 = sphi 0, %s96
    %s99 = sphi 0, %s98
    %s113 = sphi 0, %s99
    %s117 = sphi 0, %s117
    %s119 = sphi 0, %s117
    %s120 = sphi 0, %s119
    %s134 = sphi 0, %s120
    %s138 = sphi 0, %s138
    %s140 = sphi 0, %s138
    %s141 = sphi 0, %s140
    %s155 = sphi 0, %s141
    %s159 = sphi 0, %s159
    %s161 = sphi 0, %s159
    %s162 = sphi 0, %s161
    %s176 = sphi 0, %s162
    %s182 = sphi 0, %s184
    %s185 = sphi 0, %s182
    %s186 = sphi 0, %s185
    %s202 = sphi 0, %s186
    %s208 = sphi 0, %s210
    %s211 = sphi 0, %s208
    %s212 = sphi 0, %s211
    %s228 = sphi 0, %s212
  $region4: #{tpu_custom_call.1} parent=0 // loop_header_branch
    %18 = sbr.rel (%p16) target = $region8
  $region5: #{tpu_custom_call.1} parent=0 // loop_body
    %s20 = ssub.s32 %s15, 1
    %s21 = ssub.s32 %s15, 2
    %s22 = sadd.s32 %s15, 1
    %s23 = ssub.s32 %s15, %s22
    %p24 = scmp.eq.s32.totalorder %s23, 0
    %s26 = sadd.s32 %s25, 1
    %s27 = scalar_select %p24, %s25, %s26
    %p30 = pneg %p24
    %p31 = scmp.eq.s32.totalorder %s15, 1
    %p32 = por %p30, %p31
    %p33 = scmp.ne.s32.totalorder %s25, %s28
    %p34 = scmp.eq.s32.totalorder %s15, 0
    %p35 = por %p33, %p34
    %p36 = scmp.ne.s32.totalorder %s25, %s28
    %p37 = scmp.eq.s32.totalorder %s20, 1
    %p38 = por %p36, %p37
    %p39 = scmp.ne.s32.totalorder %s28, %s29
    %p40 = scmp.eq.s32.totalorder %s20, 0
    %p41 = por %p39, %p40
    %p42 = scmp.ne.s32.totalorder %s28, %s29
    %p43 = scmp.eq.s32.totalorder %s21, 1
    %p44 = por %p42, %p43
    %p46 = scmp.ne.s32.totalorder %s29, %s45
    %p47 = scmp.eq.s32.totalorder %s21, 0
    %p48 = por %p46, %p47
    %s49 = ssub.s32 %s15, %s22
    %p50 = scmp.eq.s32.totalorder %s49, 0
    %s52 = sadd.s32 %s51, 1
    %s53 = scalar_select %p50, %s51, %s52
    %p56 = pneg %p50
    %p57 = scmp.eq.s32.totalorder %s15, 1
    %p58 = por %p56, %p57
    %p59 = scmp.ne.s32.totalorder %s51, %s54
    %p60 = scmp.eq.s32.totalorder %s15, 0
    %p61 = por %p59, %p60
    %p62 = scmp.ne.s32.totalorder %s51, %s54
    %p63 = scmp.eq.s32.totalorder %s20, 1
    %p64 = por %p62, %p63
    %p65 = scmp.ne.s32.totalorder %s54, %s55
    %p66 = scmp.eq.s32.totalorder %s20, 0
    %p67 = por %p65, %p66
    %p68 = scmp.ne.s32.totalorder %s54, %s55
    %p69 = scmp.eq.s32.totalorder %s21, 1
    %p70 = por %p68, %p69
    %p72 = scmp.ne.s32.totalorder %s55, %s71
    %p73 = scmp.eq.s32.totalorder %s21, 0
    %p74 = por %p72, %p73
    %s76 = sadd.s32 %s75, 1
    %p79 = scmp.eq.s32.totalorder %s15, 1
    %p80 = scmp.ne.s32.totalorder %s75, %s77
    %p81 = scmp.eq.s32.totalorder %s15, 0
    %p82 = por %p80, %p81
    %p83 = scmp.ne.s32.totalorder %s75, %s77
    %p84 = scmp.eq.s32.totalorder %s20, 1
    %p85 = por %p83, %p84
    %p86 = scmp.ne.s32.totalorder %s77, %s78
    %p87 = scmp.eq.s32.totalorder %s20, 0
    %p88 = por %p86, %p87
    %p89 = scmp.ne.s32.totalorder %s77, %s78
    %p90 = scmp.eq.s32.totalorder %s21, 1
    %p91 = por %p89, %p90
    %p93 = scmp.ne.s32.totalorder %s78, %s92
    %p94 = scmp.eq.s32.totalorder %s21, 0
    %p95 = por %p93, %p94
    %s97 = sadd.s32 %s96, 1
    %p100 = scmp.eq.s32.totalorder %s15, 1
    %p101 = scmp.ne.s32.totalorder %s96, %s98
    %p102 = scmp.eq.s32.totalorder %s15, 0
    %p103 = por %p101, %p102
    %p104 = scmp.ne.s32.totalorder %s96, %s98
    %p105 = scmp.eq.s32.totalorder %s20, 1
    %p106 = por %p104, %p105
    %p107 = scmp.ne.s32.totalorder %s98, %s99
    %p108 = scmp.eq.s32.totalorder %s20, 0
    %p109 = por %p107, %p108
    %p110 = scmp.ne.s32.totalorder %s98, %s99
    %p111 = scmp.eq.s32.totalorder %s21, 1
    %p112 = por %p110, %p111
    %p114 = scmp.ne.s32.totalorder %s99, %s113
    %p115 = scmp.eq.s32.totalorder %s21, 0
    %p116 = por %p114, %p115
    %s118 = sadd.s32 %s117, 1
    %p121 = scmp.eq.s32.totalorder %s15, 1
    %p122 = scmp.ne.s32.totalorder %s117, %s119
    %p123 = scmp.eq.s32.totalorder %s15, 0
    %p124 = por %p122, %p123
    %p125 = scmp.ne.s32.totalorder %s117, %s119
    %p126 = scmp.eq.s32.totalorder %s20, 1
    %p127 = por %p125, %p126
    %p128 = scmp.ne.s32.totalorder %s119, %s120
    %p129 = scmp.eq.s32.totalorder %s20, 0
    %p130 = por %p128, %p129
    %p131 = scmp.ne.s32.totalorder %s119, %s120
    %p132 = scmp.eq.s32.totalorder %s21, 1
    %p133 = por %p131, %p132
    %p135 = scmp.ne.s32.totalorder %s120, %s134
    %p136 = scmp.eq.s32.totalorder %s21, 0
    %p137 = por %p135, %p136
    %s139 = sadd.s32 %s138, 1
    %p142 = scmp.eq.s32.totalorder %s15, 1
    %p143 = scmp.ne.s32.totalorder %s138, %s140
    %p144 = scmp.eq.s32.totalorder %s15, 0
    %p145 = por %p143, %p144
    %p146 = scmp.ne.s32.totalorder %s138, %s140
    %p147 = scmp.eq.s32.totalorder %s20, 1
    %p148 = por %p146, %p147
    %p149 = scmp.ne.s32.totalorder %s140, %s141
    %p150 = scmp.eq.s32.totalorder %s20, 0
    %p151 = por %p149, %p150
    %p152 = scmp.ne.s32.totalorder %s140, %s141
    %p153 = scmp.eq.s32.totalorder %s21, 1
    %p154 = por %p152, %p153
    %p156 = scmp.ne.s32.totalorder %s141, %s155
    %p157 = scmp.eq.s32.totalorder %s21, 0
    %p158 = por %p156, %p157
    %s160 = sadd.s32 %s159, 1
    %p163 = scmp.eq.s32.totalorder %s15, 1
    %p164 = scmp.ne.s32.totalorder %s159, %s161
    %p165 = scmp.eq.s32.totalorder %s15, 0
    %p166 = por %p164, %p165
    %p167 = scmp.ne.s32.totalorder %s159, %s161
    %p168 = scmp.eq.s32.totalorder %s20, 1
    %p169 = por %p167, %p168
    %p170 = scmp.ne.s32.totalorder %s161, %s162
    %p171 = scmp.eq.s32.totalorder %s20, 0
    %p172 = por %p170, %p171
    %p173 = scmp.ne.s32.totalorder %s161, %s162
    %p174 = scmp.eq.s32.totalorder %s21, 1
    %p175 = por %p173, %p174
    %p177 = scmp.ne.s32.totalorder %s162, %s176
    %p178 = scmp.eq.s32.totalorder %s21, 0
    %p179 = por %p177, %p178
    %s180 = ssub.s32 %s15, %s22
    %p181 = scmp.eq.s32.totalorder %s180, 0
    %s183 = sadd.s32 %s182, 1
    %s184 = scalar_select %p181, %s182, %s183
    %p187 = pneg %p181
    %p188 = scmp.eq.s32.totalorder %s15, 1
    %p189 = por %p187, %p188
    %p190 = scmp.ne.s32.totalorder %s182, %s185
    %p191 = scmp.eq.s32.totalorder %s15, 0
    %p192 = por %p190, %p191
    %p193 = scmp.ne.s32.totalorder %s182, %s185
    %p194 = scmp.eq.s32.totalorder %s20, 1
    %p195 = por %p193, %p194
    %p196 = scmp.ne.s32.totalorder %s185, %s186
    %p197 = scmp.eq.s32.totalorder %s20, 0
    %p198 = por %p196, %p197
    %p199 = scmp.ne.s32.totalorder %s185, %s186
    %p200 = scmp.eq.s32.totalorder %s21, 1
    %p201 = por %p199, %p200
    %p203 = scmp.ne.s32.totalorder %s186, %s202
    %p204 = scmp.eq.s32.totalorder %s21, 0
    %p205 = por %p203, %p204
    %s206 = ssub.s32 %s15, %s22
    %p207 = scmp.eq.s32.totalorder %s206, 0
    %s209 = sadd.s32 %s208, 1
    %s210 = scalar_select %p207, %s208, %s209
    %p213 = pneg %p207
    %p214 = scmp.eq.s32.totalorder %s15, 1
    %p215 = por %p213, %p214
    %p216 = scmp.ne.s32.totalorder %s208, %s211
    %p217 = scmp.eq.s32.totalorder %s15, 0
    %p218 = por %p216, %p217
    %p219 = scmp.ne.s32.totalorder %s208, %s211
    %p220 = scmp.eq.s32.totalorder %s20, 1
    %p221 = por %p219, %p220
    %p222 = scmp.ne.s32.totalorder %s211, %s212
    %p223 = scmp.eq.s32.totalorder %s20, 0
    %p224 = por %p222, %p223
    %p225 = scmp.ne.s32.totalorder %s211, %s212
    %p226 = scmp.eq.s32.totalorder %s21, 1
    %p227 = por %p225, %p226
    %p229 = scmp.ne.s32.totalorder %s212, %s228
    %p230 = scmp.eq.s32.totalorder %s21, 0
    %p231 = por %p229, %p230
    %p232 = scmp.le.s32.totalorder 1, %s15
    %p233 = scmp.lt.s32.totalorder %s15, 3
    %p234 = pnand %p232, %p233
    %p235 = pneg %p234
    // Predicated region
    $region9: #{tpu_custom_call.1} parent=5 // pred_check
      _
    $region10: #{tpu_custom_call.1} parent=5 // pred_check_branch
      %237 = sbr.rel (%p234) target = $region12
    $region11: #{tpu_custom_call.1} parent=5 // pred_region
      %s238 = ssub.s32 %s15, 1
      // Predicated region
      $region13: #{tpu_custom_call.1} parent=11 // pred_check
        %p239 = pneg %p88
      $region14: #{tpu_custom_call.1} parent=11 // pred_check_branch
        %241 = sbr.rel (%p239) target = $region16
      $region15: #{tpu_custom_call.1} parent=11 // pred_region
        _
      $region16: #{tpu_custom_call.1} parent=11 // pred_fallthru
        _
      // Predicated region
      $region17: #{tpu_custom_call.1} parent=11 // pred_check
        %p242 = pneg %p109
      $region18: #{tpu_custom_call.1} parent=11 // pred_check_branch
        %244 = sbr.rel (%p242) target = $region20
      $region19: #{tpu_custom_call.1} parent=11 // pred_region
        _
      $region20: #{tpu_custom_call.1} parent=11 // pred_fallthru
        _
      // Predicated region
      $region21: #{tpu_custom_call.1} parent=11 // pred_check
        %p245 = pneg %p130
      $region22: #{tpu_custom_call.1} parent=11 // pred_check_branch
        %247 = sbr.rel (%p245) target = $region24
      $region23: #{tpu_custom_call.1} parent=11 // pred_region
        _
      $region24: #{tpu_custom_call.1} parent=11 // pred_fallthru
        _
      // Predicated region
      $region25: #{tpu_custom_call.1} parent=11 // pred_check
        %p248 = pneg %p151
      $region26: #{tpu_custom_call.1} parent=11 // pred_check_branch
        %250 = sbr.rel (%p248) target = $region28
      $region27: #{tpu_custom_call.1} parent=11 // pred_region
        _
      $region28: #{tpu_custom_call.1} parent=11 // pred_fallthru
        _
      // Predicated region
      $region29: #{tpu_custom_call.1} parent=11 // pred_check
        %p251 = pneg %p172
      $region30: #{tpu_custom_call.1} parent=11 // pred_check_branch
        %253 = sbr.rel (%p251) target = $region32
      $region31: #{tpu_custom_call.1} parent=11 // pred_region
        _
      $region32: #{tpu_custom_call.1} parent=11 // pred_fallthru
        _
    $region12: #{tpu_custom_call.1} parent=5 // pred_fallthru
      _
    %p254 = scmp.lt.s32.totalorder %s15, 2
    // Predicated region
    $region33: #{tpu_custom_call.1} parent=5 // pred_check
      %p255 = pneg %p254
    $region34: #{tpu_custom_call.1} parent=5 // pred_check_branch
      %257 = sbr.rel (%p255) target = $region36
    $region35: #{tpu_custom_call.1} parent=5 // pred_region
      // Predicated region
      $region37: #{tpu_custom_call.1} parent=35 // pred_check
        %p258 = pneg %p35
      $region38: #{tpu_custom_call.1} parent=35 // pred_check_branch
        %260 = sbr.rel (%p258) target = $region40
      $region39: #{tpu_custom_call.1} parent=35 // pred_region
        %p261 = scmp.lt.s32.totalorder %s15, 1
        %s262 = scalar_select %p261, %s15, 1
        %s263 = smul.addr %s262, 16
        %s264 = smul.addr %s263, 8
        %s265 = scalar_lea.vmem %s0, %s264
      $region40: #{tpu_custom_call.1} parent=35 // pred_fallthru
        _
      // Predicated region
      $region41: #{tpu_custom_call.1} parent=35 // pred_check
        %p266 = pneg %p61
      $region42: #{tpu_custom_call.1} parent=35 // pred_check_branch
        %268 = sbr.rel (%p266) target = $region44
      $region43: #{tpu_custom_call.1} parent=35 // pred_region
        %p269 = scmp.lt.s32.totalorder %s15, 1
        %s270 = scalar_select %p269, %s15, 1
        %s271 = smul.addr %s270, 8
        %s272 = smul.addr %s271, 8
        %s273 = scalar_lea.vmem %s1, %s272
      $region44: #{tpu_custom_call.1} parent=35 // pred_fallthru
        _
    $region36: #{tpu_custom_call.1} parent=5 // pred_fallthru
      _
    %p274 = scmp.le.s32.totalorder 1, %s15
    %p275 = scmp.lt.s32.totalorder %s15, 3
    %p276 = pnand %p274, %p275
    %p277 = pneg %p276
    // Predicated region
    $region45: #{tpu_custom_call.1} parent=5 // pred_check
      _
    $region46: #{tpu_custom_call.1} parent=5 // pred_check_branch
      %279 = sbr.rel (%p276) target = $region48
    $region47: #{tpu_custom_call.1} parent=5 // pred_region
      %s280 = ssub.s32 %s15, 1
      %p281 = scmp.lt.s32.totalorder %s20, 1
      %s282 = scalar_select %p281, %s20, 1
      %s283 = smul.addr %s282, 16
      %s284 = smul.addr %s283, 8
      %s285 = scalar_lea.vmem %s0, %s284
      %p286 = pneg %p41
      %p287 = pneg %p38
      %p288 = scmp.lt.s32.totalorder %s20, 1
      %s289 = scalar_select %p288, %s20, 1
      %s290 = smul.addr %s289, 8
      %s291 = smul.addr %s290, 8
      %s292 = scalar_lea.vmem %s1, %s291
      %p293 = pneg %p67
      %p294 = pneg %p64
      %p295 = pneg %p88
      %p296 = pneg %p85
      %p297 = pneg %p109
      %p298 = pneg %p106
      %p299 = pneg %p130
      %p300 = pneg %p127
      %p301 = pneg %p151
      %p302 = pneg %p148
      %p303 = pneg %p172
      %p304 = pneg %p169
      %p305 = pneg %p198
      %p306 = pneg %p195
      %p307 = scmp.lt.s32.totalorder %s20, 1
      %s308 = scalar_select %p307, %s20, 1
      %s309 = smul.addr %s308, 8
      %s310 = smul.addr %s309, 8
      %s311 = scalar_lea.vmem %s7, %s310
      %p312 = pneg %p224
      %p313 = pneg %p221
      %p314 = scmp.lt.s32.totalorder %s20, 1
      %s315 = scalar_select %p314, %s20, 1
      %s316 = smul.addr %s315, 8
      %s317 = smul.addr %s316, 8
      %s318 = scalar_lea.vmem %s8, %s317
      %p319 = scmp.lt.s32.totalorder %s20, 1
      %s320 = scalar_select %p319, %s20, 1
      %s321 = smul.addr %s320, 16
      %s322 = smul.addr %s321, 8
      %s323 = scalar_lea.vmem %s0, %s322
      %p324 = scmp.lt.s32.totalorder %s20, 1
      %s325 = scalar_select %p324, %s20, 1
      %s326 = smul.addr %s325, 8
      %s327 = smul.addr %s326, 8
      %s328 = scalar_lea.vmem %s1, %s327
      %p329 = scmp.lt.s32.totalorder %s20, 1
      %s330 = scalar_select %p329, %s20, 1
      %s331 = smul.addr %s330, 8
      %s332 = smul.addr %s331, 8
      %s333 = scalar_lea.vmem %s7, %s332
      %p334 = scmp.lt.s32.totalorder %s20, 1
      %s335 = scalar_select %p334, %s20, 1
      %s336 = smul.addr %s335, 8
      %s337 = smul.addr %s336, 8
      %s338 = scalar_lea.vmem %s8, %s337
      %v339 = vld [vmem:[%s328] sm:$0xff]
      %v340 = vld [vmem:[%s328 + $0x8] sm:$0xff]
      %v341 = vld [vmem:[%s328 + $0x10] sm:$0xff]
      %v342 = vld [vmem:[%s328 + $0x18] sm:$0xff]
      %v343 = vld [vmem:[%s328 + $0x20] sm:$0xff]
      %v344 = vld [vmem:[%s328 + $0x28] sm:$0xff]
      %v345 = vld [vmem:[%s328 + $0x30] sm:$0xff]
      %v346 = vld [vmem:[%s328 + $0x38] sm:$0xff]
      %v347 = vld [vmem:[%s4] sm:$0xff]
      %v348 = vld [vmem:[%s4 + $0x8] sm:$0xff]
      %v349 = vld [vmem:[%s6] sm:$0x1]
      %v351 = vlaneseq
      %v352 = vshrl.u32 %v351, 7
      %v353 = vsub.s32 0, %v352
      %v354 = vrot.slane %v349, %v353
      %vm356 = vcmask 130048
      %v358 = vsel %vm356, %v339, 0
      %v361 = vsel %vm356, %v340, 0
      %v364 = vsel %vm356, %v341, 0
      %v367 = vsel %vm356, %v342, 0
      %v370 = vsel %vm356, %v343, 0
      %v373 = vsel %vm356, %v344, 0
      %v376 = vsel %vm356, %v345, 0
      %v379 = vsel %vm356, %v346, 0
      %381 = vmatprep.subr.mxu0 0.0
      %382 = vmatpush1.msra.mxu0 %v347
      %383 = vmatprep.subr.mxu0 0.0
      %384 = vmatpush1.msra.mxu0 %v348
      %385 = vmatprep.subr.mxu0 0.0
      %386 = vmatpush1.msra.mxu0 0.0
      %387 = vmatprep.subr.mxu0 0.0
      %388 = vmatpush1.msra.mxu0 0.0
      %389 = vmatprep.subr.mxu0 0.0
      %390 = vmatpush1.msra.mxu0 0.0
      %391 = vmatprep.subr.mxu0 0.0
      %392 = vmatpush1.msra.mxu0 0.0
      %393 = vmatprep.subr.mxu0 0.0
      %394 = vmatpush1.msra.mxu0 0.0
      %395 = vmatprep.subr.mxu0 0.0
      %396 = vmatpush1.msra.mxu0 0.0
      %397 = vmatprep.subr.mxu0 0.0
      %398 = vmatpush1.msra.mxu0 0.0
      %399 = vmatprep.subr.mxu0 0.0
      %400 = vmatpush1.msra.mxu0 0.0
      %401 = vmatprep.subr.mxu0 0.0
      %402 = vmatpush1.msra.mxu0 0.0
      %403 = vmatprep.subr.mxu0 0.0
      %404 = vmatpush1.msra.mxu0 0.0
      %405 = vmatprep.subr.mxu0 0.0
      %406 = vmatpush1.msra.mxu0 0.0
      %407 = vmatprep.subr.mxu0 0.0
      %408 = vmatpush1.msra.mxu0 0.0
      %409 = vmatprep.subr.mxu0 0.0
      %410 = vmatpush1.msra.mxu0 0.0
      %411 = vmatprep.subr.mxu0 0.0
      %412 = vmatpush1.msra.mxu0 0.0
      %413 = vmatprep.subr.mxu0 0.0
      %414 = vmatpush1.msra.mxu0 0.0
      %415 = vmatprep.subr.mxu0 0.0
      %416 = vmatpush1.msra.mxu0 0.0
      %417 = vmatprep.subr.mxu0 0.0
      %418 = vmatpush1.msra.mxu0 0.0
      %419 = vmatprep.subr.mxu0 0.0
      %420 = vmatpush1.msra.mxu0 0.0
      %421 = vmatprep.subr.mxu0 0.0
      %422 = vmatpush1.msra.mxu0 0.0
      %423 = vmatprep.subr.mxu0 0.0
      %424 = vmatpush1.msra.mxu0 0.0
      %425 = vmatprep.subr.mxu0 0.0
      %426 = vmatpush1.msra.mxu0 0.0
      %427 = vmatprep.subr.mxu0 0.0
      %428 = vmatpush1.msra.mxu0 0.0
      %429 = vmatprep.subr.mxu0 0.0
      %430 = vmatpush1.msra.mxu0 0.0
      %431 = vmatprep.subr.mxu0 0.0
      %432 = vmatpush1.msra.mxu0 0.0
      %433 = vmatprep.subr.mxu0 0.0
      %434 = vmatpush1.msra.mxu0 0.0
      %435 = vmatprep.subr.mxu0 0.0
      %436 = vmatpush1.msra.mxu0 0.0
      %437 = vmatprep.subr.mxu0 0.0
      %438 = vmatpush1.msra.mxu0 0.0
      %439 = vmatprep.subr.mxu0 0.0
      %440 = vmatpush1.msra.mxu0 0.0
      %441 = vmatprep.subr.mxu0 0.0
      %442 = vmatpush1.msra.mxu0 0.0
      %443 = vmatprep.subr.mxu0 0.0
      %444 = vmatpush1.msra.mxu0 0.0
      %445 = vmatprep.mubr.f32.mxu0 0.0
      %446 = vmatmul.mubr.f32.gmra.mrb[0].mxu0 %v358
      %v447 = vpop.f32.mrb[0].mxu0
      %v448 = vadd.f32 %v354, %v447
      %v449 = vpop.f32.mrb[0].mxu0
      %450 = vmatprep.mubr.f32.mxu0 0.0
      %451 = vmatmul.mubr.f32.gmra.mrb[0].mxu0 %v361
      %v452 = vpop.f32.mrb[0].mxu0
      %v453 = vadd.f32 %v354, %v452
      %v454 = vpop.f32.mrb[0].mxu0
      %455 = vmatprep.mubr.f32.mxu0 0.0
      %456 = vmatmul.mubr.f32.gmra.mrb[0].mxu0 %v364
      %v457 = vpop.f32.mrb[0].mxu0
      %v458 = vadd.f32 %v354, %v457
      %v459 = vpop.f32.mrb[0].mxu0
      %460 = vmatprep.mubr.f32.mxu0 0.0
      %461 = vmatmul.mubr.f32.gmra.mrb[0].mxu0 %v367
      %v462 = vpop.f32.mrb[0].mxu0
      %v463 = vadd.f32 %v354, %v462
      %v464 = vpop.f32.mrb[0].mxu0
      %465 = vmatprep.mubr.f32.mxu0 0.0
      %466 = vmatmul.mubr.f32.gmra.mrb[0].mxu0 %v370
      %v467 = vpop.f32.mrb[0].mxu0
      %v468 = vadd.f32 %v354, %v467
      %v469 = vpop.f32.mrb[0].mxu0
      %470 = vmatprep.mubr.f32.mxu0 0.0
      %471 = vmatmul.mubr.f32.gmra.mrb[0].mxu0 %v373
      %v472 = vpop.f32.mrb[0].mxu0
      %v473 = vadd.f32 %v354, %v472
      %v474 = vpop.f32.mrb[0].mxu0
      %475 = vmatprep.mubr.f32.mxu0 0.0
      %476 = vmatmul.mubr.f32.gmra.mrb[0].mxu0 %v376
      %v477 = vpop.f32.mrb[0].mxu0
      %v478 = vadd.f32 %v354, %v477
      %v479 = vpop.f32.mrb[0].mxu0
      %480 = vmatprep.mubr.f32.mxu0 0.0
      %481 = vmatmul.mubr.f32.gmra.mrb[0].mxu0 %v379
      %v482 = vpop.f32.mrb[0].mxu0
      %v483 = vadd.f32 %v354, %v482
      %v484 = vpop.f32.mrb[0].mxu0
      %485 = vdwg.mxu0
      %vm486 = vcmask 31744
      %487 = vst.msk [vmem:[%s338] sm:$0xff] %vm486, %v448
      %488 = vst.msk [vmem:[%s338 + $0x8] sm:$0xff] %vm486, %v453
      %489 = vst.msk [vmem:[%s338 + $0x10] sm:$0xff] %vm486, %v458
      %490 = vst.msk [vmem:[%s338 + $0x18] sm:$0xff] %vm486, %v463
      %491 = vst.msk [vmem:[%s338 + $0x20] sm:$0xff] %vm486, %v468
      %492 = vst.msk [vmem:[%s338 + $0x28] sm:$0xff] %vm486, %v473
      %493 = vst.msk [vmem:[%s338 + $0x30] sm:$0xff] %vm486, %v478
      %494 = vst.msk [vmem:[%s338 + $0x38] sm:$0xff] %vm486, %v483
      %v495 = vld [vmem:[%s323] sm:$0xff]
      %v496 = vld [vmem:[%s323 + $0x8] sm:$0x1]
      %v497 = vld [vmem:[%s323 + $0x10] sm:$0xff]
      %v498 = vld [vmem:[%s323 + $0x18] sm:$0x1]
      %v499 = vld [vmem:[%s323 + $0x20] sm:$0xff]
      %v500 = vld [vmem:[%s323 + $0x28] sm:$0x1]
      %v501 = vld [vmem:[%s323 + $0x30] sm:$0xff]
      %v502 = vld [vmem:[%s323 + $0x38] sm:$0x1]
      %v503 = vld [vmem:[%s323 + $0x40] sm:$0xff]
      %v504 = vld [vmem:[%s323 + $0x48] sm:$0x1]
      %v505 = vld [vmem:[%s323 + $0x50] sm:$0xff]
      %v506 = vld [vmem:[%s323 + $0x58] sm:$0x1]
      %v507 = vld [vmem:[%s323 + $0x60] sm:$0xff]
      %v508 = vld [vmem:[%s323 + $0x68] sm:$0x1]
      %v509 = vld [vmem:[%s323 + $0x70] sm:$0xff]
      %v510 = vld [vmem:[%s323 + $0x78] sm:$0x1]
      %vm527 = vcmask 1046528
      %v528 = vrot.slane %v495, 1
      %v529 = vrot.slane %v496, 1
      %v530 = vsel %vm527, %v528, %v529
      %v531 = vrot.slane %v497, 1
      %v532 = vrot.slane %v498, 1
      %v533 = vsel %vm527, %v531, %v532
      %v534 = vrot.slane %v499, 1
      %v535 = vrot.slane %v500, 1
      %v536 = vsel %vm527, %v534, %v535
      %v537 = vrot.slane %v501, 1
      %v538 = vrot.slane %v502, 1
      %v539 = vsel %vm527, %v537, %v538
      %v540 = vrot.slane %v503, 1
      %v541 = vrot.slane %v504, 1
      %v542 = vsel %vm527, %v540, %v541
      %v543 = vrot.slane %v505, 1
      %v544 = vrot.slane %v506, 1
      %v545 = vsel %vm527, %v543, %v544
      %v546 = vrot.slane %v507, 1
      %v547 = vrot.slane %v508, 1
      %v548 = vsel %vm527, %v546, %v547
      %v549 = vrot.slane %v509, 1
      %v550 = vrot.slane %v510, 1
      %v551 = vsel %vm527, %v549, %v550
      %v552 = vld [vmem:[%s2] sm:$0xff]
      %v553 = vld [vmem:[%s2 + $0x8] sm:$0xff]
      %v554 = vld [vmem:[%s3] sm:$0xff]
      %v555 = vld [vmem:[%s3 + $0x8] sm:$0xff]
      %v556 = vsel %vm356, %v530, 0
      %v558 = vsel %vm356, %v533, 0
      %v560 = vsel %vm356, %v536, 0
      %v562 = vsel %vm356, %v539, 0
      %v564 = vsel %vm356, %v542, 0
      %v566 = vsel %vm356, %v545, 0
      %v568 = vsel %vm356, %v548, 0
      %v570 = vsel %vm356, %v551, 0
      %572 = vmatprep.subr.mxu0 0.0
      %573 = vmatpush1.msra.mxu0 %v554
      %574 = vmatprep.subr.mxu0 0.0
      %575 = vmatpush1.msra.mxu0 %v555
      %576 = vmatprep.subr.mxu0 0.0
      %577 = vmatpush1.msra.mxu0 0.0
      %578 = vmatprep.subr.mxu0 0.0
      %579 = vmatpush1.msra.mxu0 0.0
      %580 = vmatprep.subr.mxu0 0.0
      %581 = vmatpush1.msra.mxu0 0.0
      %582 = vmatprep.subr.mxu0 0.0
      %583 = vmatpush1.msra.mxu0 0.0
      %584 = vmatprep.subr.mxu0 0.0
      %585 = vmatpush1.msra.mxu0 0.0
      %586 = vmatprep.subr.mxu0 0.0
      %587 = vmatpush1.msra.mxu0 0.0
      %588 = vmatprep.subr.mxu0 0.0
      %589 = vmatpush1.msra.mxu0 0.0
      %590 = vmatprep.subr.mxu0 0.0
      %591 = vmatpush1.msra.mxu0 0.0
      %592 = vmatprep.subr.mxu0 0.0
      %593 = vmatpush1.msra.mxu0 0.0
      %594 = vmatprep.subr.mxu0 0.0
      %595 = vmatpush1.msra.mxu0 0.0
      %596 = vmatprep.subr.mxu0 0.0
      %597 = vmatpush1.msra.mxu0 0.0
      %598 = vmatprep.subr.mxu0 0.0
      %599 = vmatpush1.msra.mxu0 0.0
      %600 = vmatprep.subr.mxu0 0.0
      %601 = vmatpush1.msra.mxu0 0.0
      %602 = vmatprep.subr.mxu0 0.0
      %603 = vmatpush1.msra.mxu0 0.0
      %604 = vmatprep.subr.mxu0 0.0
      %605 = vmatpush1.msra.mxu0 0.0
      %606 = vmatprep.subr.mxu0 0.0
      %607 = vmatpush1.msra.mxu0 0.0
      %608 = vmatprep.subr.mxu0 0.0
      %609 = vmatpush1.msra.mxu0 0.0
      %610 = vmatprep.subr.mxu0 0.0
      %611 = vmatpush1.msra.mxu0 0.0
      %612 = vmatprep.subr.mxu0 0.0
      %613 = vmatpush1.msra.mxu0 0.0
      %614 = vmatprep.subr.mxu0 0.0
      %615 = vmatpush1.msra.mxu0 0.0
      %616 = vmatprep.subr.mxu0 0.0
      %617 = vmatpush1.msra.mxu0 0.0
      %618 = vmatprep.subr.mxu0 0.0
      %619 = vmatpush1.msra.mxu0 0.0
      %620 = vmatprep.subr.mxu0 0.0
      %621 = vmatpush1.msra.mxu0 0.0
      %622 = vmatprep.subr.mxu0 0.0
      %623 = vmatpush1.msra.mxu0 0.0
      %624 = vmatprep.subr.mxu0 0.0
      %625 = vmatpush1.msra.mxu0 0.0
      %626 = vmatprep.subr.mxu0 0.0
      %627 = vmatpush1.msra.mxu0 0.0
      %628 = vmatprep.subr.mxu0 0.0
      %629 = vmatpush1.msra.mxu0 0.0
      %630 = vmatprep.subr.mxu0 0.0
      %631 = vmatpush1.msra.mxu0 0.0
      %632 = vmatprep.subr.mxu0 0.0
      %633 = vmatpush1.msra.mxu0 0.0
      %634 = vmatprep.subr.mxu0 0.0
      %635 = vmatpush1.msra.mxu0 0.0
      %636 = vmatprep.mubr.f32.mxu0 0.0
      %637 = vmatmul.mubr.f32.gmra.mrb[0].mxu0 %v556
      %v638 = vpop.f32.mrb[0].mxu0
      %v639 = vadd.f32 0.0, %v638
      %v640 = vpop.f32.mrb[0].mxu0
      %641 = vmatprep.mubr.f32.mxu0 0.0
      %642 = vmatmul.mubr.f32.gmra.mrb[0].mxu0 %v558
      %v643 = vpop.f32.mrb[0].mxu0
      %v644 = vadd.f32 0.0, %v643
      %v645 = vpop.f32.mrb[0].mxu0
      %646 = vmatprep.mubr.f32.mxu0 0.0
      %647 = vmatmul.mubr.f32.gmra.mrb[0].mxu0 %v560
      %v648 = vpop.f32.mrb[0].mxu0
      %v649 = vadd.f32 0.0, %v648
      %v650 = vpop.f32.mrb[0].mxu0
      %651 = vmatprep.mubr.f32.mxu0 0.0
      %652 = vmatmul.mubr.f32.gmra.mrb[0].mxu0 %v562
      %v653 = vpop.f32.mrb[0].mxu0
      %v654 = vadd.f32 0.0, %v653
      %v655 = vpop.f32.mrb[0].mxu0
      %656 = vmatprep.mubr.f32.mxu0 0.0
      %657 = vmatmul.mubr.f32.gmra.mrb[0].mxu0 %v564
      %v658 = vpop.f32.mrb[0].mxu0
      %v659 = vadd.f32 0.0, %v658
      %v660 = vpop.f32.mrb[0].mxu0
      %661 = vmatprep.mubr.f32.mxu0 0.0
      %662 = vmatmul.mubr.f32.gmra.mrb[0].mxu0 %v566
      %v663 = vpop.f32.mrb[0].mxu0
      %v664 = vadd.f32 0.0, %v663
      %v665 = vpop.f32.mrb[0].mxu0
      %666 = vmatprep.mubr.f32.mxu0 0.0
      %667 = vmatmul.mubr.f32.gmra.mrb[0].mxu0 %v568
      %v668 = vpop.f32.mrb[0].mxu0
      %v669 = vadd.f32 0.0, %v668
      %v670 = vpop.f32.mrb[0].mxu0
      %671 = vmatprep.mubr.f32.mxu0 0.0
      %672 = vmatmul.mubr.f32.gmra.mrb[0].mxu0 %v570
      %v673 = vpop.f32.mrb[0].mxu0
      %v674 = vadd.f32 0.0, %v673
      %v675 = vpop.f32.mrb[0].mxu0
      %676 = vdwg.mxu0
      %v677 = vsel %vm356, %v495, 0
      %v679 = vsel %vm356, %v497, 0
      %v681 = vsel %vm356, %v499, 0
      %v683 = vsel %vm356, %v501, 0
      %v685 = vsel %vm356, %v503, 0
      %v687 = vsel %vm356, %v505, 0
      %v689 = vsel %vm356, %v507, 0
      %v691 = vsel %vm356, %v509, 0
      %693 = vmatprep.subr.mxu0 0.0
      %694 = vmatpush1.msra.mxu0 %v552
      %695 = vmatprep.subr.mxu0 0.0
      %696 = vmatpush1.msra.mxu0 %v553
      %697 = vmatprep.subr.mxu0 0.0
      %698 = vmatpush1.msra.mxu0 0.0
      %699 = vmatprep.subr.mxu0 0.0
      %700 = vmatpush1.msra.mxu0 0.0
      %701 = vmatprep.subr.mxu0 0.0
      %702 = vmatpush1.msra.mxu0 0.0
      %703 = vmatprep.subr.mxu0 0.0
      %704 = vmatpush1.msra.mxu0 0.0
      %705 = vmatprep.subr.mxu0 0.0
      %706 = vmatpush1.msra.mxu0 0.0
      %707 = vmatprep.subr.mxu0 0.0
      %708 = vmatpush1.msra.mxu0 0.0
      %709 = vmatprep.subr.mxu0 0.0
      %710 = vmatpush1.msra.mxu0 0.0
      %711 = vmatprep.subr.mxu0 0.0
      %712 = vmatpush1.msra.mxu0 0.0
      %713 = vmatprep.subr.mxu0 0.0
      %714 = vmatpush1.msra.mxu0 0.0
      %715 = vmatprep.subr.mxu0 0.0
      %716 = vmatpush1.msra.mxu0 0.0
      %717 = vmatprep.subr.mxu0 0.0
      %718 = vmatpush1.msra.mxu0 0.0
      %719 = vmatprep.subr.mxu0 0.0
      %720 = vmatpush1.msra.mxu0 0.0
      %721 = vmatprep.subr.mxu0 0.0
      %722 = vmatpush1.msra.mxu0 0.0
      %723 = vmatprep.subr.mxu0 0.0
      %724 = vmatpush1.msra.mxu0 0.0
      %725 = vmatprep.subr.mxu0 0.0
      %726 = vmatpush1.msra.mxu0 0.0
      %727 = vmatprep.subr.mxu0 0.0
      %728 = vmatpush1.msra.mxu0 0.0
      %729 = vmatprep.subr.mxu0 0.0
      %730 = vmatpush1.msra.mxu0 0.0
      %731 = vmatprep.subr.mxu0 0.0
      %732 = vmatpush1.msra.mxu0 0.0
      %733 = vmatprep.subr.mxu0 0.0
      %734 = vmatpush1.msra.mxu0 0.0
      %735 = vmatprep.subr.mxu0 0.0
      %736 = vmatpush1.msra.mxu0 0.0
      %737 = vmatprep.subr.mxu0 0.0
      %738 = vmatpush1.msra.mxu0 0.0
      %739 = vmatprep.subr.mxu0 0.0
      %740 = vmatpush1.msra.mxu0 0.0
      %741 = vmatprep.subr.mxu0 0.0
      %742 = vmatpush1.msra.mxu0 0.0
      %743 = vmatprep.subr.mxu0 0.0
      %744 = vmatpush1.msra.mxu0 0.0
      %745 = vmatprep.subr.mxu0 0.0
      %746 = vmatpush1.msra.mxu0 0.0
      %747 = vmatprep.subr.mxu0 0.0
      %748 = vmatpush1.msra.mxu0 0.0
      %749 = vmatprep.subr.mxu0 0.0
      %750 = vmatpush1.msra.mxu0 0.0
      %751 = vmatprep.subr.mxu0 0.0
      %752 = vmatpush1.msra.mxu0 0.0
      %753 = vmatprep.subr.mxu0 0.0
      %754 = vmatpush1.msra.mxu0 0.0
      %755 = vmatprep.subr.mxu0 0.0
      %756 = vmatpush1.msra.mxu0 0.0
      %757 = vmatprep.mubr.f32.mxu0 0.0
      %758 = vmatmul.mubr.f32.gmra.mrb[0].mxu0 %v677
      %v759 = vpop.f32.mrb[0].mxu0
      %v760 = vadd.f32 %v639, %v759
      %v761 = vpop.f32.mrb[0].mxu0
      %762 = vmatprep.mubr.f32.mxu0 0.0
      %763 = vmatmul.mubr.f32.gmra.mrb[0].mxu0 %v679
      %v764 = vpop.f32.mrb[0].mxu0
      %v765 = vadd.f32 %v644, %v764
      %v766 = vpop.f32.mrb[0].mxu0
      %767 = vmatprep.mubr.f32.mxu0 0.0
      %768 = vmatmul.mubr.f32.gmra.mrb[0].mxu0 %v681
      %v769 = vpop.f32.mrb[0].mxu0
      %v770 = vadd.f32 %v649, %v769
      %v771 = vpop.f32.mrb[0].mxu0
      %772 = vmatprep.mubr.f32.mxu0 0.0
      %773 = vmatmul.mubr.f32.gmra.mrb[0].mxu0 %v683
      %v774 = vpop.f32.mrb[0].mxu0
      %v775 = vadd.f32 %v654, %v774
      %v776 = vpop.f32.mrb[0].mxu0
      %777 = vmatprep.mubr.f32.mxu0 0.0
      %778 = vmatmul.mubr.f32.gmra.mrb[0].mxu0 %v685
      %v779 = vpop.f32.mrb[0].mxu0
      %v780 = vadd.f32 %v659, %v779
      %v781 = vpop.f32.mrb[0].mxu0
      %782 = vmatprep.mubr.f32.mxu0 0.0
      %783 = vmatmul.mubr.f32.gmra.mrb[0].mxu0 %v687
      %v784 = vpop.f32.mrb[0].mxu0
      %v785 = vadd.f32 %v664, %v784
      %v786 = vpop.f32.mrb[0].mxu0
      %787 = vmatprep.mubr.f32.mxu0 0.0
      %788 = vmatmul.mubr.f32.gmra.mrb[0].mxu0 %v689
      %v789 = vpop.f32.mrb[0].mxu0
      %v790 = vadd.f32 %v669, %v789
      %v791 = vpop.f32.mrb[0].mxu0
      %792 = vmatprep.mubr.f32.mxu0 0.0
      %793 = vmatmul.mubr.f32.gmra.mrb[0].mxu0 %v691
      %v794 = vpop.f32.mrb[0].mxu0
      %v795 = vadd.f32 %v674, %v794
      %v796 = vpop.f32.mrb[0].mxu0
      %797 = vdwg.mxu0
      %v798 = vld [vmem:[%s5] sm:$0x1]
      %v800 = vlaneseq
      %v801 = vshrl.u32 %v800, 7
      %v802 = vsub.s32 0, %v801
      %v803 = vrot.slane %v798, %v802
      %v805 = vadd.f32 %v760, %v803
      %v806 = vadd.f32 %v765, %v803
      %v807 = vadd.f32 %v770, %v803
      %v808 = vadd.f32 %v775, %v803
      %v809 = vadd.f32 %v780, %v803
      %v810 = vadd.f32 %v785, %v803
      %v811 = vadd.f32 %v790, %v803
      %v812 = vadd.f32 %v795, %v803
      %813 = vst.msk [vmem:[%s333] sm:$0xff] %vm486, %v805
      %814 = vst.msk [vmem:[%s333 + $0x8] sm:$0xff] %vm486, %v806
      %815 = vst.msk [vmem:[%s333 + $0x10] sm:$0xff] %vm486, %v807
      %816 = vst.msk [vmem:[%s333 + $0x18] sm:$0xff] %vm486, %v808
      %817 = vst.msk [vmem:[%s333 + $0x20] sm:$0xff] %vm486, %v809
      %818 = vst.msk [vmem:[%s333 + $0x28] sm:$0xff] %vm486, %v810
      %819 = vst.msk [vmem:[%s333 + $0x30] sm:$0xff] %vm486, %v811
      %820 = vst.msk [vmem:[%s333 + $0x38] sm:$0xff] %vm486, %v812
      %p821 = scmp.lt.s32.totalorder %s20, 1
      %s822 = scalar_select %p821, %s20, 1
      %s823 = smul.addr %s822, 8
      %s824 = smul.addr %s823, 8
      %s825 = scalar_lea.vmem %s7, %s824
      %p826 = scmp.lt.s32.totalorder %s20, 1
      %s827 = scalar_select %p826, %s20, 1
      %s828 = smul.addr %s827, 8
      %s829 = smul.addr %s828, 8
      %s830 = scalar_lea.vmem %s8, %s829
      // Predicated region
      $region49: #{tpu_custom_call.1} parent=47 // pred_check
        %p831 = pneg %p195
      $region50: #{tpu_custom_call.1} parent=47 // pred_check_branch
        %833 = sbr.rel (%p831) target = $region52
      $region51: #{tpu_custom_call.1} parent=47 // pred_region
        _
      $region52: #{tpu_custom_call.1} parent=47 // pred_fallthru
        _
      // Predicated region
      $region53: #{tpu_custom_call.1} parent=47 // pred_check
        %p834 = pneg %p221
      $region54: #{tpu_custom_call.1} parent=47 // pred_check_branch
        %836 = sbr.rel (%p834) target = $region56
      $region55: #{tpu_custom_call.1} parent=47 // pred_region
        _
      $region56: #{tpu_custom_call.1} parent=47 // pred_fallthru
        _
    $region48: #{tpu_custom_call.1} parent=5 // pred_fallthru
      _
    %p837 = scmp.le.s32.totalorder 2, %s15
    // Predicated region
    $region57: #{tpu_custom_call.1} parent=5 // pred_check
      %p838 = pneg %p837
    $region58: #{tpu_custom_call.1} parent=5 // pred_check_branch
      %840 = sbr.rel (%p838) target = $region60
    $region59: #{tpu_custom_call.1} parent=5 // pred_region
      %s841 = ssub.s32 %s15, 2
      // Predicated region
      $region61: #{tpu_custom_call.1} parent=59 // pred_check
        %p842 = pneg %p201
      $region62: #{tpu_custom_call.1} parent=59 // pred_check_branch
        %844 = sbr.rel (%p842) target = $region64
      $region63: #{tpu_custom_call.1} parent=59 // pred_region
        %p845 = scmp.lt.s32.totalorder %s21, 1
        %s846 = scalar_select %p845, %s21, 1
        %s847 = smul.addr %s846, 8
        %s848 = smul.addr %s847, 8
        %s849 = scalar_lea.vmem %s7, %s848
      $region64: #{tpu_custom_call.1} parent=59 // pred_fallthru
        _
      // Predicated region
      $region65: #{tpu_custom_call.1} parent=59 // pred_check
        %p850 = pneg %p227
      $region66: #{tpu_custom_call.1} parent=59 // pred_check_branch
        %852 = sbr.rel (%p850) target = $region68
      $region67: #{tpu_custom_call.1} parent=59 // pred_region
        %p853 = scmp.lt.s32.totalorder %s21, 1
        %s854 = scalar_select %p853, %s21, 1
        %s855 = smul.addr %s854, 8
        %s856 = smul.addr %s855, 8
        %s857 = scalar_lea.vmem %s8, %s856
      $region68: #{tpu_custom_call.1} parent=59 // pred_fallthru
        _
    $region60: #{tpu_custom_call.1} parent=5 // pred_fallthru
      _
  $region6: #{tpu_custom_call.1} parent=0 // loop_footer
    %s19 = sadd.s32 1, %s15
  $region7: #{tpu_custom_call.1} parent=0 // loop_footer_branch
    %14 = sbr.rel target = $region3
  $region8: #{tpu_custom_call.1} parent=0 // loop_exit
    _

</llo_original>
